<compile_context>
chip_gen: v7x
topology: tpu7x:2x2x1
jax: 0.10.0
libtpu: 0.0.40
codegen_flags: <defaults>
</compile_context>

<pallas_src>
import functools

import jax
import jax.numpy as jnp
from jax.experimental import pallas as pl
from jax.experimental.pallas import tpu as pltpu


def rnn_kernel(x_ref, wih_ref, whh_ref, b_ref, h_out_ref, *, seq_len, batch):
    """Single invocation: whole sequence in VMEM.

    x_ref:   (S*B, I) f32   inputs, time-major rows (rows t*B:(t+1)*B are x_t)
    wih_ref: (I, H)   f32   W_ih^T
    whh_ref: (H, H)   bf16  W_hh^T
    b_ref:   (1, H)   f32   b_ih + b_hh (fused)
    h_out:   (B, H)   f32   final hidden state
    """
    # Hoisted input projection + fused bias: one MXU matmul, off the serial
    # dependency chain.  (Half-lane / quarter-depth MXU fill here is fine --
    # it is a single off-critical-path matmul; do not pad I to 128.)
    xw = (jnp.dot(x_ref[...], wih_ref[...], preferred_element_type=jnp.float32)
          + b_ref[...])                       # (S*B, H) f32

    whh = whh_ref[...]                        # (H, H) bf16, loaded once

    # Peeled t=0: h_0 is all zeros, so h @ W_hh^T contributes nothing.
    h = jnp.tanh(xw[0:batch, :])              # (B, H) f32

    # Remaining steps.  seq_len is small and static, so the Python loop fully
    # unrolls at trace time; the serial chain per step is a single-pass bf16
    # MXU matmul (f32 accumulate) -> VALU add -> EUP tanh.  Slices of xw are
    # static and sublane-aligned (batch is a multiple of 8).
    # TODO(synk): if the bundle dump shows Mosaic re-pushing the 128x128 RHS
    # every step, hold W_hh in the MXU weight registers across steps via
    # pltpu.matmul_push_rhs / matmul_acc_lhs / matmul_pop.
    for t in range(1, seq_len):
        z = xw[t * batch:(t + 1) * batch, :] + jnp.dot(
            h.astype(jnp.bfloat16), whh, preferred_element_type=jnp.float32)
        h = jnp.tanh(z)

    h_out_ref[...] = h.astype(h_out_ref.dtype)


def rnn_hidden(x, w_ih, w_hh, b_ih, b_hh):
    """x: (S, B, I) float32. Returns hidden: (1, B, H) float32."""
    S, B, I = x.shape
    H = w_ih.shape[0]

    # Pad batch to a multiple of 8 sublanes -> aligned slices, unmasked store.
    B_pad = ((B + 7) // 8) * 8
    if B_pad != B:
        x = jnp.pad(x, ((0, 0), (0, B_pad - B), (0, 0)))

    # Plain-JAX glue outside the kernel: time-major 2-D view, transposed
    # weights (recurrent weights in bf16), folded bias.
    x2d = x.reshape(S * B_pad, I)                      # (S*B, I) f32
    wih_t = w_ih.T                                     # (I, H)   f32
    whh_t = w_hh.T.astype(jnp.bfloat16)                # (H, H)   bf16
    b = (b_ih + b_hh).reshape(1, H)                    # (1, H)   f32

    kernel = functools.partial(rnn_kernel, seq_len=S, batch=B_pad)

    h_last = pl.pallas_call(
        kernel,
        out_shape=jax.ShapeDtypeStruct((B_pad, H), jnp.float32),
        grid=(1,),
        in_specs=[
            pl.BlockSpec((S * B_pad, I), lambda i: (0, 0)),   # all inputs
            pl.BlockSpec((I, H), lambda i: (0, 0)),           # W_ih^T
            pl.BlockSpec((H, H), lambda i: (0, 0)),           # W_hh^T (bf16)
            pl.BlockSpec((1, H), lambda i: (0, 0)),           # fused bias
        ],
        out_specs=pl.BlockSpec((B_pad, H), lambda i: (0, 0)),
        compiler_params=pltpu.CompilerParams(
            dimension_semantics=("arbitrary",)),
    )(x2d, wih_t, whh_t, b)

    # Drop batch padding, add the num_layers=1 leading dim.
    return h_last[:B][None]   # (1, B, H)


def rnn_hidden_ref(x, w_ih, w_hh, b_ih, b_hh):
    """Pure-JAX f32 reference (lax.scan) matching torch.nn.RNN semantics."""
    S, B, I = x.shape
    H = w_ih.shape[0]
    h0 = jnp.zeros((B, H), jnp.float32)

    def step(h, x_t):
        h_new = jnp.tanh(x_t @ w_ih.T + b_ih + h @ w_hh.T + b_hh)
        return h_new, None

    h_last, _ = jax.lax.scan(step, h0, x)
    return h_last[None]  # (1, B, H)


if __name__ == "__main__":
    S, B, I, H = 8, 2, 64, 128  # seq=8, batch=2, input_size=64, hidden=128

    key = jax.random.PRNGKey(0)
    kx, k1, k2, k3, k4 = jax.random.split(key, 5)

    # Deterministic init mirroring nn.RNN's U(-1/sqrt(H), 1/sqrt(H)).
    bound = 1.0 / jnp.sqrt(jnp.float32(H))
    x = jax.random.normal(kx, (S, B, I), dtype=jnp.float32)
    w_ih = jax.random.uniform(k1, (H, I), jnp.float32, -bound, bound)
    w_hh = jax.random.uniform(k2, (H, H), jnp.float32, -bound, bound)
    b_ih = jax.random.uniform(k3, (H,), jnp.float32, -bound, bound)
    b_hh = jax.random.uniform(k4, (H,), jnp.float32, -bound, bound)

    hidden = rnn_hidden(x, w_ih, w_hh, b_ih, b_hh)
    hidden = jax.block_until_ready(hidden)

    ref = rnn_hidden_ref(x, w_ih, w_hh, b_ih, b_hh)
    assert hidden.shape == (1, B, H)
    # bf16 recurrent-matmul operands over 8 steps -> looser tolerance vs the
    # pure-f32 reference (per review).
    assert jnp.allclose(hidden, ref, atol=3e-2, rtol=3e-2)

    print("KERNEL_OK")
</pallas_src>

<mosaic_0001>
module attributes {stable_mosaic.version = 11 : i64} {
  func.func @rnn_kernel(%arg0: i32, %arg1: memref<64x64xf32, #tpu.memory_space<vmem>>, %arg2: memref<64x128xf32, #tpu.memory_space<vmem>>, %arg3: memref<128x128xbf16, #tpu.memory_space<vmem>>, %arg4: memref<1x128xf32, #tpu.memory_space<vmem>>, %arg5: memref<8x128xf32, #tpu.memory_space<vmem>>) attributes {dimension_semantics = [#tpu.dimension_semantics<arbitrary>], iteration_bounds = array<i64: 1>, scalar_prefetch = 0 : i64, scratch_operands = 0 : i64, tpu.core_type = #tpu.core_type<tc>, window_params = [{pipeline_mode = #tpu.pipeline_mode<synchronous>, transform_indices = @transform_0, window_bounds = array<i64: 64, 64>}, {pipeline_mode = #tpu.pipeline_mode<synchronous>, transform_indices = @transform_1, window_bounds = array<i64: 64, 128>}, {pipeline_mode = #tpu.pipeline_mode<synchronous>, transform_indices = @transform_2, window_bounds = array<i64: 128, 128>}, {pipeline_mode = #tpu.pipeline_mode<synchronous>, transform_indices = @transform_3, window_bounds = array<i64: 1, 128>}, {pipeline_mode = #tpu.pipeline_mode<synchronous>, transform_indices = @transform_4, window_bounds = array<i64: 8, 128>}]} {
    %c0 = arith.constant 0 : index
    %c0_0 = arith.constant 0 : index
    %0 = vector.load %arg1[%c0, %c0_0] : memref<64x64xf32, #tpu.memory_space<vmem>>, vector<64x64xf32>
    %c0_1 = arith.constant 0 : index
    %c0_2 = arith.constant 0 : index
    %1 = vector.load %arg2[%c0_1, %c0_2] : memref<64x128xf32, #tpu.memory_space<vmem>>, vector<64x128xf32>
    %cst = arith.constant dense<0.000000e+00> : vector<64x128xf32>
    %2 = tpu.matmul %0, %1, %cst {dimension_numbers = #tpu.dot_dimension_numbers<[1], [0], [0], [1], [0, 0, 1, 1], [], []>} : vector<64x64xf32>, vector<64x128xf32>, vector<64x128xf32> -> vector<64x128xf32>
    %c0_3 = arith.constant 0 : index
    %c0_4 = arith.constant 0 : index
    %3 = vector.load %arg4[%c0_3, %c0_4] : memref<1x128xf32, #tpu.memory_space<vmem>>, vector<1x128xf32>
    %4 = vector.broadcast %3 : vector<1x128xf32> to vector<64x128xf32>
    %5 = arith.addf %2, %4 : vector<64x128xf32>
    %c0_5 = arith.constant 0 : index
    %c0_6 = arith.constant 0 : index
    %6 = vector.load %arg3[%c0_5, %c0_6] : memref<128x128xbf16, #tpu.memory_space<vmem>>, vector<128x128xbf16>
    %7 = vector.extract_strided_slice %5 {offsets = [0, 0], sizes = [8, 128], strides = [1, 1]} : vector<64x128xf32> to vector<8x128xf32>
    %8 = math.tanh %7 : vector<8x128xf32>
    %9 = vector.extract_strided_slice %5 {offsets = [8, 0], sizes = [8, 128], strides = [1, 1]} : vector<64x128xf32> to vector<8x128xf32>
    %10 = arith.truncf %8 : vector<8x128xf32> to vector<8x128xbf16>
    %cst_7 = arith.constant dense<0.000000e+00> : vector<8x128xf32>
    %11 = tpu.matmul %10, %6, %cst_7 {dimension_numbers = #tpu.dot_dimension_numbers<[1], [0], [0], [1], [0, 0, 1, 1], [], []>} : vector<8x128xbf16>, vector<128x128xbf16>, vector<8x128xf32> -> vector<8x128xf32>
    %12 = arith.addf %9, %11 : vector<8x128xf32>
    %13 = math.tanh %12 : vector<8x128xf32>
    %14 = vector.extract_strided_slice %5 {offsets = [16, 0], sizes = [8, 128], strides = [1, 1]} : vector<64x128xf32> to vector<8x128xf32>
    %15 = arith.truncf %13 : vector<8x128xf32> to vector<8x128xbf16>
    %cst_8 = arith.constant dense<0.000000e+00> : vector<8x128xf32>
    %16 = tpu.matmul %15, %6, %cst_8 {dimension_numbers = #tpu.dot_dimension_numbers<[1], [0], [0], [1], [0, 0, 1, 1], [], []>} : vector<8x128xbf16>, vector<128x128xbf16>, vector<8x128xf32> -> vector<8x128xf32>
    %17 = arith.addf %14, %16 : vector<8x128xf32>
    %18 = math.tanh %17 : vector<8x128xf32>
    %19 = vector.extract_strided_slice %5 {offsets = [24, 0], sizes = [8, 128], strides = [1, 1]} : vector<64x128xf32> to vector<8x128xf32>
    %20 = arith.truncf %18 : vector<8x128xf32> to vector<8x128xbf16>
    %cst_9 = arith.constant dense<0.000000e+00> : vector<8x128xf32>
    %21 = tpu.matmul %20, %6, %cst_9 {dimension_numbers = #tpu.dot_dimension_numbers<[1], [0], [0], [1], [0, 0, 1, 1], [], []>} : vector<8x128xbf16>, vector<128x128xbf16>, vector<8x128xf32> -> vector<8x128xf32>
    %22 = arith.addf %19, %21 : vector<8x128xf32>
    %23 = math.tanh %22 : vector<8x128xf32>
    %24 = vector.extract_strided_slice %5 {offsets = [32, 0], sizes = [8, 128], strides = [1, 1]} : vector<64x128xf32> to vector<8x128xf32>
    %25 = arith.truncf %23 : vector<8x128xf32> to vector<8x128xbf16>
    %cst_10 = arith.constant dense<0.000000e+00> : vector<8x128xf32>
    %26 = tpu.matmul %25, %6, %cst_10 {dimension_numbers = #tpu.dot_dimension_numbers<[1], [0], [0], [1], [0, 0, 1, 1], [], []>} : vector<8x128xbf16>, vector<128x128xbf16>, vector<8x128xf32> -> vector<8x128xf32>
    %27 = arith.addf %24, %26 : vector<8x128xf32>
    %28 = math.tanh %27 : vector<8x128xf32>
    %29 = vector.extract_strided_slice %5 {offsets = [40, 0], sizes = [8, 128], strides = [1, 1]} : vector<64x128xf32> to vector<8x128xf32>
    %30 = arith.truncf %28 : vector<8x128xf32> to vector<8x128xbf16>
    %cst_11 = arith.constant dense<0.000000e+00> : vector<8x128xf32>
    %31 = tpu.matmul %30, %6, %cst_11 {dimension_numbers = #tpu.dot_dimension_numbers<[1], [0], [0], [1], [0, 0, 1, 1], [], []>} : vector<8x128xbf16>, vector<128x128xbf16>, vector<8x128xf32> -> vector<8x128xf32>
    %32 = arith.addf %29, %31 : vector<8x128xf32>
    %33 = math.tanh %32 : vector<8x128xf32>
    %34 = vector.extract_strided_slice %5 {offsets = [48, 0], sizes = [8, 128], strides = [1, 1]} : vector<64x128xf32> to vector<8x128xf32>
    %35 = arith.truncf %33 : vector<8x128xf32> to vector<8x128xbf16>
    %cst_12 = arith.constant dense<0.000000e+00> : vector<8x128xf32>
    %36 = tpu.matmul %35, %6, %cst_12 {dimension_numbers = #tpu.dot_dimension_numbers<[1], [0], [0], [1], [0, 0, 1, 1], [], []>} : vector<8x128xbf16>, vector<128x128xbf16>, vector<8x128xf32> -> vector<8x128xf32>
    %37 = arith.addf %34, %36 : vector<8x128xf32>
    %38 = math.tanh %37 : vector<8x128xf32>
    %39 = vector.extract_strided_slice %5 {offsets = [56, 0], sizes = [8, 128], strides = [1, 1]} : vector<64x128xf32> to vector<8x128xf32>
    %40 = arith.truncf %38 : vector<8x128xf32> to vector<8x128xbf16>
    %cst_13 = arith.constant dense<0.000000e+00> : vector<8x128xf32>
    %41 = tpu.matmul %40, %6, %cst_13 {dimension_numbers = #tpu.dot_dimension_numbers<[1], [0], [0], [1], [0, 0, 1, 1], [], []>} : vector<8x128xbf16>, vector<128x128xbf16>, vector<8x128xf32> -> vector<8x128xf32>
    %42 = arith.addf %39, %41 : vector<8x128xf32>
    %43 = math.tanh %42 : vector<8x128xf32>
    %c0_14 = arith.constant 0 : index
    %c0_15 = arith.constant 0 : index
    %44 = vector.load %arg5[%c0_14, %c0_15] : memref<8x128xf32, #tpu.memory_space<vmem>>, vector<8x128xf32>
    tpu.vector_store %arg5[%c0_14, %c0_15], %43 {strides = array<i32>} : memref<8x128xf32, #tpu.memory_space<vmem>>, vector<8x128xf32>,
    return
  }
  func.func @transform_0(%arg0: i32) -> (i32, i32) {
    %c0_i32 = arith.constant 0 : i32
    %c0_i32_0 = arith.constant 0 : i32
    %c0_i32_1 = arith.constant 0 : i32
    return %c0_i32, %c0_i32_0 : i32, i32
  }
  func.func @transform_1(%arg0: i32) -> (i32, i32) {
    %c0_i32 = arith.constant 0 : i32
    %c0_i32_0 = arith.constant 0 : i32
    %c0_i32_1 = arith.constant 0 : i32
    return %c0_i32, %c0_i32_0 : i32, i32
  }
  func.func @transform_2(%arg0: i32) -> (i32, i32) {
    %c0_i32 = arith.constant 0 : i32
    %c0_i32_0 = arith.constant 0 : i32
    %c0_i32_1 = arith.constant 0 : i32
    return %c0_i32, %c0_i32_0 : i32, i32
  }
  func.func @transform_3(%arg0: i32) -> (i32, i32) {
    %c0_i32 = arith.constant 0 : i32
    %c0_i32_0 = arith.constant 0 : i32
    %c0_i32_1 = arith.constant 0 : i32
    return %c0_i32, %c0_i32_0 : i32, i32
  }
  func.func @transform_4(%arg0: i32) -> (i32, i32) {
    %c0_i32 = arith.constant 0 : i32
    %c0_i32_0 = arith.constant 0 : i32
    %c0_i32_1 = arith.constant 0 : i32
    return %c0_i32, %c0_i32_0 : i32, i32
  }
}

</mosaic_0001>

<llo_original>
// kernel: tpu_custom_call.1
$region0: #{tpu_custom_call.1}
  #allocation0 [shape = 'u32[]', space=smem, size = 0x4, offset = 0x4, fixed_abs, tag = 'smem constant byte address 0x4 - core index']
  #allocation1 [shape = 'u32[144,128]{1,0:T(1,128)}', space=vmem, size = 0x12000, scoped, tag = 'internal scratch']
  %s0 = inlined_call_operand.hbm [shape: f32[64,64], index: 0, kind: input, shape index: {}]
  %s1 = inlined_call_operand.hbm [shape: f32[64,128], index: 1, kind: input, shape index: {}]
  %s2 = inlined_call_operand.hbm [shape: bf16[128,128], index: 2, kind: input, shape index: {}]
  %s3 = inlined_call_operand.vmem [shape: f32[1,128], index: 3, kind: input, shape index: {}]
  %s4 = inlined_call_operand.hbm [shape: f32[8,128], index: 4, kind: output, shape index: {}]
  %s5 = sld [smem:[#allocation0]]
  $region38: #{tpu_custom_call.1} parent=0
    _
  %s7 = ssub.s32 1, %s5
  %s8 = scalar_select 0, %s7, %s5
  $region1: #{tpu_custom_call.1} parent=0
    #allocation2 [shape = 'u8[32768]{0}', space=vmem, size = 0x8000, scoped, tag = 'input window, operand 0, single buffered']
    #allocation3 [shape = 's32[1]{0}', space=sflag, size = 0x4, scoped, tag = 'scoped memory for tpu_custom_call.1']
    #allocation4 [shape = 's32[1]{0}', space=sflag, size = 0x4, scoped, tag = 'scoped memory for tpu_custom_call.1']
    #allocation5 [shape = 'u8[32768]{0}', space=vmem, size = 0x8000, scoped, tag = 'input window, operand 1, single buffered']
    #allocation6 [shape = 's32[1]{0}', space=sflag, size = 0x4, scoped, tag = 'scoped memory for tpu_custom_call.1']
    #allocation7 [shape = 'u8[32768]{0}', space=vmem, size = 0x8000, scoped, tag = 'input window, operand 2, single buffered']
    #allocation8 [shape = 'u8[4096]{0}', space=vmem, size = 0x1000, scoped, tag = 'output window, operand 0, single buffered']
    %9 = vsyncpa [#allocation3], 0
    %10 = vsyncpa [#allocation6], 0
    %11 = vsyncpa [#allocation4], 0
    // Predicated region
    $region2: #{tpu_custom_call.1} parent=1 // pred_check
      _
    $region3: #{tpu_custom_call.1} parent=1 // pred_check_branch
      %13 = sbr.rel (0) target = $region5
    $region4: #{tpu_custom_call.1} parent=1 // pred_region
      %s15 = ssub.s32 1024, 1024
      %16 = vsyncadd [#allocation3], %s15
      %s17 = sshll.u32 [#allocation2], 4
      %s18 = int_to_ptr.vmem [resolvable:$true] %s17
      %23 = dma.hbm_to_vmem [thread:$0]  %s0, 1024, %s18, [#allocation3], 128, 128, 8
    $region5: #{tpu_custom_call.1} parent=1 // pred_fallthru
      _
    // Predicated region
    $region6: #{tpu_custom_call.1} parent=1 // pred_check
      _
    $region7: #{tpu_custom_call.1} parent=1 // pred_check_branch
      %25 = sbr.rel (0) target = $region9
    $region8: #{tpu_custom_call.1} parent=1 // pred_region
      %s27 = ssub.s32 1024, 1024
      %28 = vsyncadd [#allocation6], %s27
      %s29 = sshll.u32 [#allocation5], 4
      %s30 = int_to_ptr.vmem [resolvable:$true] %s29
      %35 = dma.hbm_to_vmem [thread:$0]  %s1, 1024, %s30, [#allocation6], 128, 128, 8
    $region9: #{tpu_custom_call.1} parent=1 // pred_fallthru
      _
    // Predicated region
    $region10: #{tpu_custom_call.1} parent=1 // pred_check
      _
    $region11: #{tpu_custom_call.1} parent=1 // pred_check_branch
      %37 = sbr.rel (0) target = $region13
    $region12: #{tpu_custom_call.1} parent=1 // pred_region
      %s39 = ssub.s32 1024, 1024
      %40 = vsyncadd [#allocation6], %s39
      %s41 = sshll.u32 [#allocation7], 4
      %s42 = int_to_ptr.vmem [resolvable:$true] %s41
      %47 = dma.hbm_to_vmem [thread:$0]  %s2, 1024, %s42, [#allocation6], 64, 64, 4
    $region13: #{tpu_custom_call.1} parent=1 // pred_fallthru
      _
    // Predicated region
    $region14: #{tpu_custom_call.1} parent=1 // pred_check
      _
    $region15: #{tpu_custom_call.1} parent=1 // pred_check_branch
      %49 = sbr.rel (0) target = $region17
    $region16: #{tpu_custom_call.1} parent=1 // pred_region
      _
    $region17: #{tpu_custom_call.1} parent=1 // pred_fallthru
      _
    // Predicated region
    $region18: #{tpu_custom_call.1} parent=1 // pred_check
      _
    $region19: #{tpu_custom_call.1} parent=1 // pred_check_branch
      %51 = sbr.rel (0) target = $region21
    $region20: #{tpu_custom_call.1} parent=1 // pred_region
      %52 = dma.done [#allocation3], 1024
    $region21: #{tpu_custom_call.1} parent=1 // pred_fallthru
      _
    // Predicated region
    $region22: #{tpu_custom_call.1} parent=1 // pred_check
      _
    $region23: #{tpu_custom_call.1} parent=1 // pred_check_branch
      %54 = sbr.rel (0) target = $region25
    $region24: #{tpu_custom_call.1} parent=1 // pred_region
      %55 = dma.done [#allocation6], 1024
    $region25: #{tpu_custom_call.1} parent=1 // pred_fallthru
      _
    // Predicated region
    $region26: #{tpu_custom_call.1} parent=1 // pred_check
      _
    $region27: #{tpu_custom_call.1} parent=1 // pred_check_branch
      %57 = sbr.rel (0) target = $region29
    $region28: #{tpu_custom_call.1} parent=1 // pred_region
      %58 = dma.done [#allocation6], 1024
    $region29: #{tpu_custom_call.1} parent=1 // pred_fallthru
      _
    %v60 = vld [vmem:[#allocation2] sm:$0xff]
    %v61 = vld [vmem:[#allocation2 + $0x8] sm:$0xff]
    %v62 = vld [vmem:[#allocation2 + $0x10] sm:$0xff]
    %v63 = vld [vmem:[#allocation2 + $0x18] sm:$0xff]
    %v64 = vld [vmem:[#allocation2 + $0x20] sm:$0xff]
    %v65 = vld [vmem:[#allocation2 + $0x28] sm:$0xff]
    %v66 = vld [vmem:[#allocation2 + $0x30] sm:$0xff]
    %v67 = vld [vmem:[#allocation2 + $0x38] sm:$0xff]
    %v68 = vld [vmem:[#allocation5] sm:$0xff]
    %v69 = vld [vmem:[#allocation5 + $0x8] sm:$0xff]
    %v70 = vld [vmem:[#allocation5 + $0x10] sm:$0xff]
    %v71 = vld [vmem:[#allocation5 + $0x18] sm:$0xff]
    %v72 = vld [vmem:[#allocation5 + $0x20] sm:$0xff]
    %v73 = vld [vmem:[#allocation5 + $0x28] sm:$0xff]
    %v74 = vld [vmem:[#allocation5 + $0x30] sm:$0xff]
    %v75 = vld [vmem:[#allocation5 + $0x38] sm:$0xff]
    %v76 = vld [vmem:[%s3] sm:$0x1]
    %v78 = vlaneseq
    %v79 = vshrl.u32 %v78, 7
    %v80 = vsub.s32 0, %v79
    %v81 = vrot.slane %v76, %v80
    %vm83 = vcmask 523264
    %v85 = vsel %vm83, %v60, 0
    %v88 = vsel %vm83, %v61, 0
    %v91 = vsel %vm83, %v62, 0
    %v94 = vsel %vm83, %v63, 0
    %v97 = vsel %vm83, %v64, 0
    %v100 = vsel %vm83, %v65, 0
    %v103 = vsel %vm83, %v66, 0
    %v106 = vsel %vm83, %v67, 0
    %108 = vmatprep.subr.mxu0 0.0
    %109 = vmatpush1.msra.mxu0 %v68
    %110 = vmatprep.subr.mxu0 0.0
    %111 = vmatpush1.msra.mxu0 %v69
    %112 = vmatprep.subr.mxu0 0.0
    %113 = vmatpush1.msra.mxu0 %v70
    %114 = vmatprep.subr.mxu0 0.0
    %115 = vmatpush1.msra.mxu0 %v71
    %116 = vmatprep.subr.mxu0 0.0
    %117 = vmatpush1.msra.mxu0 %v72
    %118 = vmatprep.subr.mxu0 0.0
    %119 = vmatpush1.msra.mxu0 %v73
    %120 = vmatprep.subr.mxu0 0.0
    %121 = vmatpush1.msra.mxu0 %v74
    %122 = vmatprep.subr.mxu0 0.0
    %123 = vmatpush1.msra.mxu0 %v75
    %124 = vmatprep.subr.mxu0 0.0
    %125 = vmatpush1.msra.mxu0 0.0
    %126 = vmatprep.subr.mxu0 0.0
    %127 = vmatpush1.msra.mxu0 0.0
    %128 = vmatprep.subr.mxu0 0.0
    %129 = vmatpush1.msra.mxu0 0.0
    %130 = vmatprep.subr.mxu0 0.0
    %131 = vmatpush1.msra.mxu0 0.0
    %132 = vmatprep.subr.mxu0 0.0
    %133 = vmatpush1.msra.mxu0 0.0
    %134 = vmatprep.subr.mxu0 0.0
    %135 = vmatpush1.msra.mxu0 0.0
    %136 = vmatprep.subr.mxu0 0.0
    %137 = vmatpush1.msra.mxu0 0.0
    %138 = vmatprep.subr.mxu0 0.0
    %139 = vmatpush1.msra.mxu0 0.0
    %140 = vmatprep.subr.mxu0 0.0
    %141 = vmatpush1.msra.mxu0 0.0
    %142 = vmatprep.subr.mxu0 0.0
    %143 = vmatpush1.msra.mxu0 0.0
    %144 = vmatprep.subr.mxu0 0.0
    %145 = vmatpush1.msra.mxu0 0.0
    %146 = vmatprep.subr.mxu0 0.0
    %147 = vmatpush1.msra.mxu0 0.0
    %148 = vmatprep.subr.mxu0 0.0
    %149 = vmatpush1.msra.mxu0 0.0
    %150 = vmatprep.subr.mxu0 0.0
    %151 = vmatpush1.msra.mxu0 0.0
    %152 = vmatprep.subr.mxu0 0.0
    %153 = vmatpush1.msra.mxu0 0.0
    %154 = vmatprep.subr.mxu0 0.0
    %155 = vmatpush1.msra.mxu0 0.0
    %156 = vmatprep.subr.mxu0 0.0
    %157 = vmatpush1.msra.mxu0 0.0
    %158 = vmatprep.subr.mxu0 0.0
    %159 = vmatpush1.msra.mxu0 0.0
    %160 = vmatprep.subr.mxu0 0.0
    %161 = vmatpush1.msra.mxu0 0.0
    %162 = vmatprep.subr.mxu0 0.0
    %163 = vmatpush1.msra.mxu0 0.0
    %164 = vmatprep.subr.mxu0 0.0
    %165 = vmatpush1.msra.mxu0 0.0
    %166 = vmatprep.subr.mxu0 0.0
    %167 = vmatpush1.msra.mxu0 0.0
    %168 = vmatprep.subr.mxu0 0.0
    %169 = vmatpush1.msra.mxu0 0.0
    %170 = vmatprep.subr.mxu0 0.0
    %171 = vmatpush1.msra.mxu0 0.0
    %172 = vmatprep.mubr.f32.mxu0 0.0
    %173 = vmatmul.mubr.f32.gmra.mrb[0].mxu0 %v85
    %v174 = vpop.f32.mrb[0].mxu0
    %v175 = vadd.f32 %v81, %v174
    %v176 = vpop.f32.mrb[0].mxu0
    %177 = vmatprep.mubr.f32.mxu0 0.0
    %178 = vmatmul.mubr.f32.gmra.mrb[0].mxu0 %v88
    %v179 = vpop.f32.mrb[0].mxu0
    %v180 = vadd.f32 %v81, %v179
    %v181 = vpop.f32.mrb[0].mxu0
    %182 = vmatprep.mubr.f32.mxu0 0.0
    %183 = vmatmul.mubr.f32.gmra.mrb[0].mxu0 %v91
    %v184 = vpop.f32.mrb[0].mxu0
    %v185 = vadd.f32 %v81, %v184
    %v186 = vpop.f32.mrb[0].mxu0
    %187 = vmatprep.mubr.f32.mxu0 0.0
    %188 = vmatmul.mubr.f32.gmra.mrb[0].mxu0 %v94
    %v189 = vpop.f32.mrb[0].mxu0
    %v190 = vadd.f32 %v81, %v189
    %v191 = vpop.f32.mrb[0].mxu0
    %192 = vmatprep.mubr.f32.mxu0 0.0
    %193 = vmatmul.mubr.f32.gmra.mrb[0].mxu0 %v97
    %v194 = vpop.f32.mrb[0].mxu0
    %v195 = vadd.f32 %v81, %v194
    %v196 = vpop.f32.mrb[0].mxu0
    %197 = vmatprep.mubr.f32.mxu0 0.0
    %198 = vmatmul.mubr.f32.gmra.mrb[0].mxu0 %v100
    %v199 = vpop.f32.mrb[0].mxu0
    %v200 = vadd.f32 %v81, %v199
    %v201 = vpop.f32.mrb[0].mxu0
    %202 = vmatprep.mubr.f32.mxu0 0.0
    %203 = vmatmul.mubr.f32.gmra.mrb[0].mxu0 %v103
    %v204 = vpop.f32.mrb[0].mxu0
    %v205 = vadd.f32 %v81, %v204
    %v206 = vpop.f32.mrb[0].mxu0
    %207 = vmatprep.mubr.f32.mxu0 0.0
    %208 = vmatmul.mubr.f32.gmra.mrb[0].mxu0 %v106
    %v209 = vpop.f32.mrb[0].mxu0
    %v210 = vadd.f32 %v81, %v209
    %v211 = vpop.f32.mrb[0].mxu0
    %212 = vdwg.mxu0
    %v213 = vld [vmem:[#allocation7] sm:$0xf]
    %v214 = vld [vmem:[#allocation7 + $0x4] sm:$0xf]
    %v215 = vld [vmem:[#allocation7 + $0x8] sm:$0xf]
    %v216 = vld [vmem:[#allocation7 + $0xc] sm:$0xf]
    %v217 = vld [vmem:[#allocation7 + $0x10] sm:$0xf]
    %v218 = vld [vmem:[#allocation7 + $0x14] sm:$0xf]
    %v219 = vld [vmem:[#allocation7 + $0x18] sm:$0xf]
    %v220 = vld [vmem:[#allocation7 + $0x1c] sm:$0xf]
    %v221 = vld [vmem:[#allocation7 + $0x20] sm:$0xf]
    %v222 = vld [vmem:[#allocation7 + $0x24] sm:$0xf]
    %v223 = vld [vmem:[#allocation7 + $0x28] sm:$0xf]
    %v224 = vld [vmem:[#allocation7 + $0x2c] sm:$0xf]
    %v225 = vld [vmem:[#allocation7 + $0x30] sm:$0xf]
    %v226 = vld [vmem:[#allocation7 + $0x34] sm:$0xf]
    %v227 = vld [vmem:[#allocation7 + $0x38] sm:$0xf]
    %v228 = vld [vmem:[#allocation7 + $0x3c] sm:$0xf]
    %v229 = vtanh.pop %v175
    %v230 = vpack.c.bf16 %v229, %v229
    %v247 = vunpack.c.l.b16 %v213
    %v248 = vunpack.c.l.b16 %v214
    %v249 = vunpack.c.l.b16 %v215
    %v250 = vunpack.c.l.b16 %v216
    %v251 = vunpack.c.l.b16 %v217
    %v252 = vunpack.c.l.b16 %v218
    %v253 = vunpack.c.l.b16 %v219
    %v254 = vunpack.c.l.b16 %v220
    %v255 = vunpack.c.l.b16 %v221
    %v256 = vunpack.c.l.b16 %v222
    %v257 = vunpack.c.l.b16 %v223
    %v258 = vunpack.c.l.b16 %v224
    %v259 = vunpack.c.l.b16 %v225
    %v260 = vunpack.c.l.b16 %v226
    %v261 = vunpack.c.l.b16 %v227
    %v262 = vunpack.c.l.b16 %v228
    %v263 = vpack.c.b16 %v248, %v247
    %v264 = vpack.c.b16 %v250, %v249
    %v265 = vpack.c.b16 %v252, %v251
    %v266 = vpack.c.b16 %v254, %v253
    %v267 = vpack.c.b16 %v256, %v255
    %v268 = vpack.c.b16 %v258, %v257
    %v269 = vpack.c.b16 %v260, %v259
    %v270 = vpack.c.b16 %v262, %v261
    %279 = vmatprep.subr.bf16.mxu0 0
    %280 = vmatpush1.bf16.msra.mxu0 %v263
    %281 = vmatprep.subr.bf16.mxu0 0
    %282 = vmatpush1.bf16.msra.mxu0 %v264
    %283 = vmatprep.subr.bf16.mxu0 0
    %284 = vmatpush1.bf16.msra.mxu0 %v265
    %285 = vmatprep.subr.bf16.mxu0 0
    %286 = vmatpush1.bf16.msra.mxu0 %v266
    %287 = vmatprep.subr.bf16.mxu0 0
    %288 = vmatpush1.bf16.msra.mxu0 %v267
    %289 = vmatprep.subr.bf16.mxu0 0
    %290 = vmatpush1.bf16.msra.mxu0 %v268
    %291 = vmatprep.subr.bf16.mxu0 0
    %292 = vmatpush1.bf16.msra.mxu0 %v269
    %293 = vmatprep.subr.bf16.mxu0 0
    %294 = vmatpush1.bf16.msra.mxu0 %v270
    %295 = vmatprep.subr.bf16.mxu0 0
    %296 = vmatpush1.bf16.msra.mxu0 0
    %297 = vmatprep.subr.bf16.mxu0 0
    %298 = vmatpush1.bf16.msra.mxu0 0
    %299 = vmatprep.subr.bf16.mxu0 0
    %300 = vmatpush1.bf16.msra.mxu0 0
    %301 = vmatprep.subr.bf16.mxu0 0
    %302 = vmatpush1.bf16.msra.mxu0 0
    %303 = vmatprep.subr.bf16.mxu0 0
    %304 = vmatpush1.bf16.msra.mxu0 0
    %305 = vmatprep.subr.bf16.mxu0 0
    %306 = vmatpush1.bf16.msra.mxu0 0
    %307 = vmatprep.subr.bf16.mxu0 0
    %308 = vmatpush1.bf16.msra.mxu0 0
    %309 = vmatprep.subr.bf16.mxu0 0
    %310 = vmatpush1.bf16.msra.mxu0 0
    %311 = vmatprep.mubr.bf16.mxu0 0
    %312 = vmatmul.mubr.bf16.gmra.mrb[0].mxu0 %v230
    %v313 = vpop.f32.mrb[0].mxu0
    %v314 = vadd.f32 0.0, %v313
    %v315 = vpop.f32.mrb[0].mxu0
    %v316 = vpop.f32.mrb[0].mxu0
    %v317 = vpop.f32.mrb[0].mxu0
    %318 = vdwg.mxu0
    %v319 = vadd.f32 %v180, %v314
    %v320 = vtanh.pop %v319
    %v321 = vpack.c.bf16 %v320, %v320
    %322 = vmatprep.subr.bf16.mxu0 0
    %323 = vmatpush1.bf16.msra.mxu0 %v263
    %324 = vmatprep.subr.bf16.mxu0 0
    %325 = vmatpush1.bf16.msra.mxu0 %v264
    %326 = vmatprep.subr.bf16.mxu0 0
    %327 = vmatpush1.bf16.msra.mxu0 %v265
    %328 = vmatprep.subr.bf16.mxu0 0
    %329 = vmatpush1.bf16.msra.mxu0 %v266
    %330 = vmatprep.subr.bf16.mxu0 0
    %331 = vmatpush1.bf16.msra.mxu0 %v267
    %332 = vmatprep.subr.bf16.mxu0 0
    %333 = vmatpush1.bf16.msra.mxu0 %v268
    %334 = vmatprep.subr.bf16.mxu0 0
    %335 = vmatpush1.bf16.msra.mxu0 %v269
    %336 = vmatprep.subr.bf16.mxu0 0
    %337 = vmatpush1.bf16.msra.mxu0 %v270
    %338 = vmatprep.subr.bf16.mxu0 0
    %339 = vmatpush1.bf16.msra.mxu0 0
    %340 = vmatprep.subr.bf16.mxu0 0
    %341 = vmatpush1.bf16.msra.mxu0 0
    %342 = vmatprep.subr.bf16.mxu0 0
    %343 = vmatpush1.bf16.msra.mxu0 0
    %344 = vmatprep.subr.bf16.mxu0 0
    %345 = vmatpush1.bf16.msra.mxu0 0
    %346 = vmatprep.subr.bf16.mxu0 0
    %347 = vmatpush1.bf16.msra.mxu0 0
    %348 = vmatprep.subr.bf16.mxu0 0
    %349 = vmatpush1.bf16.msra.mxu0 0
    %350 = vmatprep.subr.bf16.mxu0 0
    %351 = vmatpush1.bf16.msra.mxu0 0
    %352 = vmatprep.subr.bf16.mxu0 0
    %353 = vmatpush1.bf16.msra.mxu0 0
    %354 = vmatprep.mubr.bf16.mxu0 0
    %355 = vmatmul.mubr.bf16.gmra.mrb[0].mxu0 %v321
    %v356 = vpop.f32.mrb[0].mxu0
    %v357 = vadd.f32 0.0, %v356
    %v358 = vpop.f32.mrb[0].mxu0
    %v359 = vpop.f32.mrb[0].mxu0
    %v360 = vpop.f32.mrb[0].mxu0
    %361 = vdwg.mxu0
    %v362 = vadd.f32 %v185, %v357
    %v363 = vtanh.pop %v362
    %v364 = vpack.c.bf16 %v363, %v363
    %365 = vmatprep.subr.bf16.mxu0 0
    %366 = vmatpush1.bf16.msra.mxu0 %v263
    %367 = vmatprep.subr.bf16.mxu0 0
    %368 = vmatpush1.bf16.msra.mxu0 %v264
    %369 = vmatprep.subr.bf16.mxu0 0
    %370 = vmatpush1.bf16.msra.mxu0 %v265
    %371 = vmatprep.subr.bf16.mxu0 0
    %372 = vmatpush1.bf16.msra.mxu0 %v266
    %373 = vmatprep.subr.bf16.mxu0 0
    %374 = vmatpush1.bf16.msra.mxu0 %v267
    %375 = vmatprep.subr.bf16.mxu0 0
    %376 = vmatpush1.bf16.msra.mxu0 %v268
    %377 = vmatprep.subr.bf16.mxu0 0
    %378 = vmatpush1.bf16.msra.mxu0 %v269
    %379 = vmatprep.subr.bf16.mxu0 0
    %380 = vmatpush1.bf16.msra.mxu0 %v270
    %381 = vmatprep.subr.bf16.mxu0 0
    %382 = vmatpush1.bf16.msra.mxu0 0
    %383 = vmatprep.subr.bf16.mxu0 0
    %384 = vmatpush1.bf16.msra.mxu0 0
    %385 = vmatprep.subr.bf16.mxu0 0
    %386 = vmatpush1.bf16.msra.mxu0 0
    %387 = vmatprep.subr.bf16.mxu0 0
    %388 = vmatpush1.bf16.msra.mxu0 0
    %389 = vmatprep.subr.bf16.mxu0 0
    %390 = vmatpush1.bf16.msra.mxu0 0
    %391 = vmatprep.subr.bf16.mxu0 0
    %392 = vmatpush1.bf16.msra.mxu0 0
    %393 = vmatprep.subr.bf16.mxu0 0
    %394 = vmatpush1.bf16.msra.mxu0 0
    %395 = vmatprep.subr.bf16.mxu0 0
    %396 = vmatpush1.bf16.msra.mxu0 0
    %397 = vmatprep.mubr.bf16.mxu0 0
    %398 = vmatmul.mubr.bf16.gmra.mrb[0].mxu0 %v364
    %v399 = vpop.f32.mrb[0].mxu0
    %v400 = vadd.f32 0.0, %v399
    %v401 = vpop.f32.mrb[0].mxu0
    %v402 = vpop.f32.mrb[0].mxu0
    %v403 = vpop.f32.mrb[0].mxu0
    %404 = vdwg.mxu0
    %v405 = vadd.f32 %v190, %v400
    %v406 = vtanh.pop %v405
    %v407 = vpack.c.bf16 %v406, %v406
    %408 = vmatprep.subr.bf16.mxu0 0
    %409 = vmatpush1.bf16.msra.mxu0 %v263
    %410 = vmatprep.subr.bf16.mxu0 0
    %411 = vmatpush1.bf16.msra.mxu0 %v264
    %412 = vmatprep.subr.bf16.mxu0 0
    %413 = vmatpush1.bf16.msra.mxu0 %v265
    %414 = vmatprep.subr.bf16.mxu0 0
    %415 = vmatpush1.bf16.msra.mxu0 %v266
    %416 = vmatprep.subr.bf16.mxu0 0
    %417 = vmatpush1.bf16.msra.mxu0 %v267
    %418 = vmatprep.subr.bf16.mxu0 0
    %419 = vmatpush1.bf16.msra.mxu0 %v268
    %420 = vmatprep.subr.bf16.mxu0 0
    %421 = vmatpush1.bf16.msra.mxu0 %v269
    %422 = vmatprep.subr.bf16.mxu0 0
    %423 = vmatpush1.bf16.msra.mxu0 %v270
    %424 = vmatprep.subr.bf16.mxu0 0
    %425 = vmatpush1.bf16.msra.mxu0 0
    %426 = vmatprep.subr.bf16.mxu0 0
    %427 = vmatpush1.bf16.msra.mxu0 0
    %428 = vmatprep.subr.bf16.mxu0 0
    %429 = vmatpush1.bf16.msra.mxu0 0
    %430 = vmatprep.subr.bf16.mxu0 0
    %431 = vmatpush1.bf16.msra.mxu0 0
    %432 = vmatprep.subr.bf16.mxu0 0
    %433 = vmatpush1.bf16.msra.mxu0 0
    %434 = vmatprep.subr.bf16.mxu0 0
    %435 = vmatpush1.bf16.msra.mxu0 0
    %436 = vmatprep.subr.bf16.mxu0 0
    %437 = vmatpush1.bf16.msra.mxu0 0
    %438 = vmatprep.subr.bf16.mxu0 0
    %439 = vmatpush1.bf16.msra.mxu0 0
    %440 = vmatprep.mubr.bf16.mxu0 0
    %441 = vmatmul.mubr.bf16.gmra.mrb[0].mxu0 %v407
    %v442 = vpop.f32.mrb[0].mxu0
    %v443 = vadd.f32 0.0, %v442
    %v444 = vpop.f32.mrb[0].mxu0
    %v445 = vpop.f32.mrb[0].mxu0
    %v446 = vpop.f32.mrb[0].mxu0
    %447 = vdwg.mxu0
    %v448 = vadd.f32 %v195, %v443
    %v449 = vtanh.pop %v448
    %v450 = vpack.c.bf16 %v449, %v449
    %451 = vmatprep.subr.bf16.mxu0 0
    %452 = vmatpush1.bf16.msra.mxu0 %v263
    %453 = vmatprep.subr.bf16.mxu0 0
    %454 = vmatpush1.bf16.msra.mxu0 %v264
    %455 = vmatprep.subr.bf16.mxu0 0
    %456 = vmatpush1.bf16.msra.mxu0 %v265
    %457 = vmatprep.subr.bf16.mxu0 0
    %458 = vmatpush1.bf16.msra.mxu0 %v266
    %459 = vmatprep.subr.bf16.mxu0 0
    %460 = vmatpush1.bf16.msra.mxu0 %v267
    %461 = vmatprep.subr.bf16.mxu0 0
    %462 = vmatpush1.bf16.msra.mxu0 %v268
    %463 = vmatprep.subr.bf16.mxu0 0
    %464 = vmatpush1.bf16.msra.mxu0 %v269
    %465 = vmatprep.subr.bf16.mxu0 0
    %466 = vmatpush1.bf16.msra.mxu0 %v270
    %467 = vmatprep.subr.bf16.mxu0 0
    %468 = vmatpush1.bf16.msra.mxu0 0
    %469 = vmatprep.subr.bf16.mxu0 0
    %470 = vmatpush1.bf16.msra.mxu0 0
    %471 = vmatprep.subr.bf16.mxu0 0
    %472 = vmatpush1.bf16.msra.mxu0 0
    %473 = vmatprep.subr.bf16.mxu0 0
    %474 = vmatpush1.bf16.msra.mxu0 0
    %475 = vmatprep.subr.bf16.mxu0 0
    %476 = vmatpush1.bf16.msra.mxu0 0
    %477 = vmatprep.subr.bf16.mxu0 0
    %478 = vmatpush1.bf16.msra.mxu0 0
    %479 = vmatprep.subr.bf16.mxu0 0
    %480 = vmatpush1.bf16.msra.mxu0 0
    %481 = vmatprep.subr.bf16.mxu0 0
    %482 = vmatpush1.bf16.msra.mxu0 0
    %483 = vmatprep.mubr.bf16.mxu0 0
    %484 = vmatmul.mubr.bf16.gmra.mrb[0].mxu0 %v450
    %v485 = vpop.f32.mrb[0].mxu0
    %v486 = vadd.f32 0.0, %v485
    %v487 = vpop.f32.mrb[0].mxu0
    %v488 = vpop.f32.mrb[0].mxu0
    %v489 = vpop.f32.mrb[0].mxu0
    %490 = vdwg.mxu0
    %v491 = vadd.f32 %v200, %v486
    %v492 = vtanh.pop %v491
    %v493 = vpack.c.bf16 %v492, %v492
    %494 = vmatprep.subr.bf16.mxu0 0
    %495 = vmatpush1.bf16.msra.mxu0 %v263
    %496 = vmatprep.subr.bf16.mxu0 0
    %497 = vmatpush1.bf16.msra.mxu0 %v264
    %498 = vmatprep.subr.bf16.mxu0 0
    %499 = vmatpush1.bf16.msra.mxu0 %v265
    %500 = vmatprep.subr.bf16.mxu0 0
    %501 = vmatpush1.bf16.msra.mxu0 %v266
    %502 = vmatprep.subr.bf16.mxu0 0
    %503 = vmatpush1.bf16.msra.mxu0 %v267
    %504 = vmatprep.subr.bf16.mxu0 0
    %505 = vmatpush1.bf16.msra.mxu0 %v268
    %506 = vmatprep.subr.bf16.mxu0 0
    %507 = vmatpush1.bf16.msra.mxu0 %v269
    %508 = vmatprep.subr.bf16.mxu0 0
    %509 = vmatpush1.bf16.msra.mxu0 %v270
    %510 = vmatprep.subr.bf16.mxu0 0
    %511 = vmatpush1.bf16.msra.mxu0 0
    %512 = vmatprep.subr.bf16.mxu0 0
    %513 = vmatpush1.bf16.msra.mxu0 0
    %514 = vmatprep.subr.bf16.mxu0 0
    %515 = vmatpush1.bf16.msra.mxu0 0
    %516 = vmatprep.subr.bf16.mxu0 0
    %517 = vmatpush1.bf16.msra.mxu0 0
    %518 = vmatprep.subr.bf16.mxu0 0
    %519 = vmatpush1.bf16.msra.mxu0 0
    %520 = vmatprep.subr.bf16.mxu0 0
    %521 = vmatpush1.bf16.msra.mxu0 0
    %522 = vmatprep.subr.bf16.mxu0 0
    %523 = vmatpush1.bf16.msra.mxu0 0
    %524 = vmatprep.subr.bf16.mxu0 0
    %525 = vmatpush1.bf16.msra.mxu0 0
    %526 = vmatprep.mubr.bf16.mxu0 0
    %527 = vmatmul.mubr.bf16.gmra.mrb[0].mxu0 %v493
    %v528 = vpop.f32.mrb[0].mxu0
    %v529 = vadd.f32 0.0, %v528
    %v530 = vpop.f32.mrb[0].mxu0
    %v531 = vpop.f32.mrb[0].mxu0
    %v532 = vpop.f32.mrb[0].mxu0
    %533 = vdwg.mxu0
    %v534 = vadd.f32 %v205, %v529
    %v535 = vtanh.pop %v534
    %v536 = vpack.c.bf16 %v535, %v535
    %537 = vmatprep.subr.bf16.mxu0 0
    %538 = vmatpush1.bf16.msra.mxu0 %v263
    %539 = vmatprep.subr.bf16.mxu0 0
    %540 = vmatpush1.bf16.msra.mxu0 %v264
    %541 = vmatprep.subr.bf16.mxu0 0
    %542 = vmatpush1.bf16.msra.mxu0 %v265
    %543 = vmatprep.subr.bf16.mxu0 0
    %544 = vmatpush1.bf16.msra.mxu0 %v266
    %545 = vmatprep.subr.bf16.mxu0 0
    %546 = vmatpush1.bf16.msra.mxu0 %v267
    %547 = vmatprep.subr.bf16.mxu0 0
    %548 = vmatpush1.bf16.msra.mxu0 %v268
    %549 = vmatprep.subr.bf16.mxu0 0
    %550 = vmatpush1.bf16.msra.mxu0 %v269
    %551 = vmatprep.subr.bf16.mxu0 0
    %552 = vmatpush1.bf16.msra.mxu0 %v270
    %553 = vmatprep.subr.bf16.mxu0 0
    %554 = vmatpush1.bf16.msra.mxu0 0
    %555 = vmatprep.subr.bf16.mxu0 0
    %556 = vmatpush1.bf16.msra.mxu0 0
    %557 = vmatprep.subr.bf16.mxu0 0
    %558 = vmatpush1.bf16.msra.mxu0 0
    %559 = vmatprep.subr.bf16.mxu0 0
    %560 = vmatpush1.bf16.msra.mxu0 0
    %561 = vmatprep.subr.bf16.mxu0 0
    %562 = vmatpush1.bf16.msra.mxu0 0
    %563 = vmatprep.subr.bf16.mxu0 0
    %564 = vmatpush1.bf16.msra.mxu0 0
    %565 = vmatprep.subr.bf16.mxu0 0
    %566 = vmatpush1.bf16.msra.mxu0 0
    %567 = vmatprep.subr.bf16.mxu0 0
    %568 = vmatpush1.bf16.msra.mxu0 0
    %569 = vmatprep.mubr.bf16.mxu0 0
    %570 = vmatmul.mubr.bf16.gmra.mrb[0].mxu0 %v536
    %v571 = vpop.f32.mrb[0].mxu0
    %v572 = vadd.f32 0.0, %v571
    %v573 = vpop.f32.mrb[0].mxu0
    %v574 = vpop.f32.mrb[0].mxu0
    %v575 = vpop.f32.mrb[0].mxu0
    %576 = vdwg.mxu0
    %v577 = vadd.f32 %v210, %v572
    %v578 = vtanh.pop %v577
    %579 = vst [vmem:[#allocation8] sm:$0xff] %v578
    // Predicated region
    $region30: #{tpu_custom_call.1} parent=1 // pred_check
      _
    $region31: #{tpu_custom_call.1} parent=1 // pred_check_branch
      %581 = sbr.rel (0) target = $region33
    $region32: #{tpu_custom_call.1} parent=1 // pred_region
      %s583 = ssub.s32 128, 128
      %584 = vsyncadd [#allocation4], %s583
      %s586 = sshll.u32 [#allocation8], 4
      %s587 = int_to_ptr.vmem [resolvable:$true] %s586
      %589 = dma.vmem_to_hbm [thread:$0]  %s587, 128, %s4, [#allocation4]
    $region33: #{tpu_custom_call.1} parent=1 // pred_fallthru
      _
    // Predicated region
    $region34: #{tpu_custom_call.1} parent=1 // pred_check
      _
    $region35: #{tpu_custom_call.1} parent=1 // pred_check_branch
      %591 = sbr.rel (0) target = $region37
    $region36: #{tpu_custom_call.1} parent=1 // pred_region
      %592 = dma.done [#allocation4], 128
    $region37: #{tpu_custom_call.1} parent=1 // pred_fallthru
      _
    %593 = vsyncpa [#allocation3], 1
    %594 = vsyncpa [#allocation6], 1
    %595 = vsyncpa [#allocation4], 1

</llo_original>
